<compile_context>
chip_gen: v6e
topology: v6e:2x2x1
jax: 0.10.0
libtpu: 0.0.40
codegen_flags: <defaults>
</compile_context>

<pallas_src>
import jax
import jax.numpy as jnp
from jax.experimental import pallas as pl
from jax.experimental.pallas import tpu as pltpu

_LANE = 128


# ------------------------------- Pallas kernel ------------------------------ #

def _attr_head_kernel(x_ref, w_ref, b_ref, o_ref):
    # x_ref: (Bb, T, C) f32   w_ref: (C, Lp) bf16   b_ref: (1, Lp) f32
    # o_ref: (Bb, Lp) f32
    x_mean = jnp.mean(x_ref[...], axis=1)                  # mean over t, in f32
    y = jnp.dot(x_mean.astype(w_ref.dtype), w_ref[...],
                preferred_element_type=jnp.float32)        # MXU, f32 accumulate
    o_ref[...] = y + b_ref[...]                            # bias add in f32


# --------------------------------- wrapper ---------------------------------- #

def attr_classifier_head(x, w_pad, b_pad, b, t, attr_len, *, block_b=None):
    """AttrClassifierHead.forward(x, b, t).

    x:      (b*t, feature_dim) f32  -- same layout PyTorch receives
    w_pad:  (feature_dim, Lp) bf16  -- transposed, lane-padded Linear weight
    b_pad:  (1, Lp) f32             -- lane-padded Linear bias
    returns (b, attr_len) f32 logits.
    """
    bt, C = x.shape
    assert bt == b * t
    Lp = w_pad.shape[1]
    x3 = x.reshape(b, t, C)                   # x.view(b, t, -1)  (free reshape)

    if block_b is None:
        block_b = b                            # whole batch in one grid step
    assert b % block_b == 0

    out = pl.pallas_call(
        _attr_head_kernel,
        out_shape=jax.ShapeDtypeStruct((b, Lp), jnp.float32),
        grid=(b // block_b,),
        in_specs=[
            pl.BlockSpec((block_b, t, C), lambda i: (i, 0, 0)),
            pl.BlockSpec((C, Lp), lambda i: (0, 0)),       # constant index_map
            pl.BlockSpec((1, Lp), lambda i: (0, 0)),       # constant index_map
        ],
        out_specs=pl.BlockSpec((block_b, Lp), lambda i: (i, 0)),
        compiler_params=pltpu.CompilerParams(
            dimension_semantics=("parallel",)),
    )(x3, w_pad, b_pad)
    return out[:, :attr_len]                  # slice off lane padding


def prepare_classifier_params(w, bias):
    """Convert PyTorch nn.Linear(feature_dim, attr_len) params for the kernel.

    w: (attr_len, feature_dim), bias: (attr_len,)  ->
    w_pad: (feature_dim, Lp) bf16, b_pad: (1, Lp) f32, Lp = round_up(attr_len, 128).
    Done once at parameter-prep time, not per forward call.
    """
    attr_len, C = w.shape
    Lp = max(_LANE, ((attr_len + _LANE - 1) // _LANE) * _LANE)
    w_pad = jnp.zeros((C, Lp), jnp.bfloat16)
    w_pad = w_pad.at[:, :attr_len].set(w.T.astype(jnp.bfloat16))
    b_pad = jnp.zeros((1, Lp), jnp.float32)
    b_pad = b_pad.at[0, :attr_len].set(bias.astype(jnp.float32))
    return w_pad, b_pad


# ----------------------------------- main ------------------------------------ #

if __name__ == "__main__":
    key = jax.random.PRNGKey(0)
    b, t, feature_dim, attr_len = 2, 4, 32, 6

    kx, kw, kb = jax.random.split(key, 3)
    x = jax.random.normal(kx, (b * t, feature_dim), jnp.float32)
    w = jax.random.normal(kw, (attr_len, feature_dim), jnp.float32) / jnp.sqrt(
        float(feature_dim))
    bias = jax.random.normal(kb, (attr_len,), jnp.float32) * 0.01

    w_pad, b_pad = prepare_classifier_params(w, bias)
    logits = attr_classifier_head(x, w_pad, b_pad, b, t, attr_len)
    jax.block_until_ready(logits)

    # reference 1: identical math (f32 mean, bf16 matmul operands, f32 accumulate)
    x_mean = jnp.mean(x.reshape(b, t, feature_dim), axis=1)
    ref_bf16 = (jnp.dot(x_mean.astype(jnp.bfloat16), w.T.astype(jnp.bfloat16),
                        preferred_element_type=jnp.float32) + bias[None, :])
    # reference 2: the original all-f32 PyTorch math (looser tol: bf16 rounding)
    ref_f32 = x_mean @ w.T + bias[None, :]

    assert logits.shape == (b, attr_len)
    assert jnp.allclose(logits, ref_bf16, atol=2e-3, rtol=2e-3)
    assert jnp.allclose(logits, ref_f32, atol=5e-2, rtol=5e-2)

    print("KERNEL_OK")
</pallas_src>

<mosaic_0001>
module attributes {stable_mosaic.version = 11 : i64} {
  func.func @_attr_head_kernel(%arg0: i32, %arg1: memref<2x4x32xf32, #tpu.memory_space<vmem>>, %arg2: memref<32x128xbf16, #tpu.memory_space<vmem>>, %arg3: memref<1x128xf32, #tpu.memory_space<vmem>>, %arg4: memref<2x128xf32, #tpu.memory_space<vmem>>) attributes {dimension_semantics = [#tpu.dimension_semantics<parallel>], iteration_bounds = array<i64: 1>, scalar_prefetch = 0 : i64, scratch_operands = 0 : i64, tpu.core_type = #tpu.core_type<tc>, window_params = [{transform_indices = @transform_0, window_bounds = array<i64: 2, 4, 32>}, {pipeline_mode = #tpu.pipeline_mode<synchronous>, transform_indices = @transform_1, window_bounds = array<i64: 32, 128>}, {pipeline_mode = #tpu.pipeline_mode<synchronous>, transform_indices = @transform_2, window_bounds = array<i64: 1, 128>}, {transform_indices = @transform_3, window_bounds = array<i64: 2, 128>}]} {
    %c0 = arith.constant 0 : index
    %c0_0 = arith.constant 0 : index
    %c0_1 = arith.constant 0 : index
    %0 = vector.load %arg1[%c0, %c0_0, %c0_1] : memref<2x4x32xf32, #tpu.memory_space<vmem>>, vector<2x4x32xf32>
    %cst = arith.constant dense<0.000000e+00> : vector<2x32xf32>
    %1 = vector.multi_reduction <add>, %0, %cst [1] : vector<2x4x32xf32> to vector<2x32xf32>
    %cst_2 = arith.constant 4.000000e+00 : f32
    %2 = vector.broadcast %cst_2 : f32 to vector<2x32xf32>
    %3 = arith.divf %1, %2 : vector<2x32xf32>
    %4 = arith.truncf %3 : vector<2x32xf32> to vector<2x32xbf16>
    %c0_3 = arith.constant 0 : index
    %c0_4 = arith.constant 0 : index
    %5 = vector.load %arg2[%c0_3, %c0_4] : memref<32x128xbf16, #tpu.memory_space<vmem>>, vector<32x128xbf16>
    %cst_5 = arith.constant dense<0.000000e+00> : vector<2x128xf32>
    %6 = tpu.matmul %4, %5, %cst_5 {dimension_numbers = #tpu.dot_dimension_numbers<[1], [0], [0], [1], [0, 0, 1, 1], [], []>} : vector<2x32xbf16>, vector<32x128xbf16>, vector<2x128xf32> -> vector<2x128xf32>
    %c0_6 = arith.constant 0 : index
    %c0_7 = arith.constant 0 : index
    %7 = vector.load %arg3[%c0_6, %c0_7] : memref<1x128xf32, #tpu.memory_space<vmem>>, vector<1x128xf32>
    %8 = vector.broadcast %7 : vector<1x128xf32> to vector<2x128xf32>
    %9 = arith.addf %6, %8 : vector<2x128xf32>
    %c0_8 = arith.constant 0 : index
    %c0_9 = arith.constant 0 : index
    %10 = vector.load %arg4[%c0_8, %c0_9] : memref<2x128xf32, #tpu.memory_space<vmem>>, vector<2x128xf32>
    tpu.vector_store %arg4[%c0_8, %c0_9], %9 {strides = array<i32>} : memref<2x128xf32, #tpu.memory_space<vmem>>, vector<2x128xf32>,
    return
  }
  func.func @transform_0(%arg0: i32) -> (i32, i32, i32) {
    %c0_i32 = arith.constant 0 : i32
    %c0_i32_0 = arith.constant 0 : i32
    %c0_i32_1 = arith.constant 0 : i32
    return %arg0, %c0_i32, %c0_i32_0 : i32, i32, i32
  }
  func.func @transform_1(%arg0: i32) -> (i32, i32) {
    %c0_i32 = arith.constant 0 : i32
    %c0_i32_0 = arith.constant 0 : i32
    %c0_i32_1 = arith.constant 0 : i32
    return %c0_i32, %c0_i32_0 : i32, i32
  }
  func.func @transform_2(%arg0: i32) -> (i32, i32) {
    %c0_i32 = arith.constant 0 : i32
    %c0_i32_0 = arith.constant 0 : i32
    %c0_i32_1 = arith.constant 0 : i32
    return %c0_i32, %c0_i32_0 : i32, i32
  }
  func.func @transform_3(%arg0: i32) -> (i32, i32) {
    %c0_i32 = arith.constant 0 : i32
    %c0_i32_0 = arith.constant 0 : i32
    return %arg0, %c0_i32 : i32, i32
  }
}

</mosaic_0001>

<llo_original>
// kernel: tpu_custom_call.1
$region0: #{tpu_custom_call.1}
  #allocation0 [shape = 'u32[]', space=smem, size = 0x4, offset = 0x4, fixed_abs, tag = 'smem constant byte address 0x4 - core index']
  #allocation1 [shape = 'u32[144,128]{1,0:T(1,128)}', space=vmem, size = 0x12000, scoped, tag = 'internal scratch']
  %s0 = inlined_call_operand.hbm [shape: f32[2,4,32], index: 0, kind: input, shape index: {}]
  %s1 = inlined_call_operand.hbm [shape: bf16[32,128], index: 1, kind: input, shape index: {}]
  %s2 = inlined_call_operand.vmem [shape: f32[1,128], index: 2, kind: input, shape index: {}]
  %s3 = inlined_call_operand.hbm [shape: f32[2,128], index: 3, kind: output, shape index: {}]
  %s4 = sld [smem:[#allocation0]]
  $region30: #{tpu_custom_call.1} parent=0
    _
  %s6 = ssub.s32 1, %s4
  %s7 = scalar_select 0, %s6, %s4
  $region1: #{tpu_custom_call.1} parent=0
    #allocation2 [shape = 'u8[4096]{0}', space=vmem, size = 0x1000, scoped, tag = 'input window, operand 0, single buffered']
    #allocation3 [shape = 's32[1]{0}', space=sflag, size = 0x4, scoped, tag = 'scoped memory for tpu_custom_call.1']
    #allocation4 [shape = 's32[1]{0}', space=sflag, size = 0x4, scoped, tag = 'scoped memory for tpu_custom_call.1']
    #allocation5 [shape = 'u8[8192]{0}', space=vmem, size = 0x2000, scoped, tag = 'input window, operand 1, single buffered']
    #allocation6 [shape = 's32[1]{0}', space=sflag, size = 0x4, scoped, tag = 'scoped memory for tpu_custom_call.1']
    #allocation7 [shape = 'u8[1024]{0}', space=vmem, size = 0x400, scoped, tag = 'output window, operand 0, single buffered']
    %8 = vsyncpa [#allocation3], 0
    %9 = vsyncpa [#allocation6], 0
    %10 = vsyncpa [#allocation4], 0
    // Predicated region
    $region2: #{tpu_custom_call.1} parent=1 // pred_check
      _
    $region3: #{tpu_custom_call.1} parent=1 // pred_check_branch
      %12 = sbr.rel (0) target = $region5
    $region4: #{tpu_custom_call.1} parent=1 // pred_region
      %s14 = ssub.s32 128, 128
      %15 = vsyncadd [#allocation3], %s14
      %s16 = sshll.u32 [#allocation2], 4
      %s17 = int_to_ptr.vmem [resolvable:$true] %s16
      %22 = dma.hbm_to_vmem [thread:$0]  %s0, 128, %s17, [#allocation3], 64, 64, 4
    $region5: #{tpu_custom_call.1} parent=1 // pred_fallthru
      _
    // Predicated region
    $region6: #{tpu_custom_call.1} parent=1 // pred_check
      _
    $region7: #{tpu_custom_call.1} parent=1 // pred_check_branch
      %24 = sbr.rel (0) target = $region9
    $region8: #{tpu_custom_call.1} parent=1 // pred_region
      %s26 = ssub.s32 256, 256
      %27 = vsyncadd [#allocation6], %s26
      %s28 = sshll.u32 [#allocation5], 4
      %s29 = int_to_ptr.vmem [resolvable:$true] %s28
      %34 = dma.hbm_to_vmem [thread:$0]  %s1, 256, %s29, [#allocation6], 64, 64, 4
    $region9: #{tpu_custom_call.1} parent=1 // pred_fallthru
      _
    // Predicated region
    $region10: #{tpu_custom_call.1} parent=1 // pred_check
      _
    $region11: #{tpu_custom_call.1} parent=1 // pred_check_branch
      %36 = sbr.rel (0) target = $region13
    $region12: #{tpu_custom_call.1} parent=1 // pred_region
      _
    $region13: #{tpu_custom_call.1} parent=1 // pred_fallthru
      _
    // Predicated region
    $region14: #{tpu_custom_call.1} parent=1 // pred_check
      _
    $region15: #{tpu_custom_call.1} parent=1 // pred_check_branch
      %38 = sbr.rel (0) target = $region17
    $region16: #{tpu_custom_call.1} parent=1 // pred_region
      %39 = dma.done [#allocation3], 128
    $region17: #{tpu_custom_call.1} parent=1 // pred_fallthru
      _
    // Predicated region
    $region18: #{tpu_custom_call.1} parent=1 // pred_check
      _
    $region19: #{tpu_custom_call.1} parent=1 // pred_check_branch
      %41 = sbr.rel (0) target = $region21
    $region20: #{tpu_custom_call.1} parent=1 // pred_region
      %42 = dma.done [#allocation6], 256
    $region21: #{tpu_custom_call.1} parent=1 // pred_fallthru
      _
    %v44 = vld [vmem:[#allocation2] sm:$0xf]
    %v45 = vld [vmem:[#allocation2 + $0x4] sm:$0xf]
    %vm46 = vcmask 257024
    %v47 = vsel %vm46, %v44, 0.0
    %v48 = vrot.slane %v47, 4
    %v49 = vadd.f32 %v47, %v48
    %v50 = vrot.slane %v49, 2
    %v51 = vadd.f32 %v49, %v50
    %v52 = vrot.slane %v51, 1
    %v53 = vadd.f32 %v51, %v52
    %v54 = vsel %vm46, %v45, 0.0
    %v55 = vrot.slane %v54, 4
    %v56 = vadd.f32 %v54, %v55
    %v57 = vrot.slane %v56, 2
    %v58 = vadd.f32 %v56, %v57
    %v59 = vrot.slane %v58, 1
    %v60 = vadd.f32 %v58, %v59
    %v61 = vrcp.pop 4.0
    %v62 = vmul.f32 %v53, %v61
    %v63 = vmul.f32 %v60, %v61
    %v64 = vpack.c.bf16 %v62, %v62
    %v65 = vpack.c.bf16 %v63, %v63
    %v66 = vld [vmem:[#allocation5] sm:$0xf]
    %v67 = vld [vmem:[#allocation5 + $0x4] sm:$0xf]
    %v68 = vld [vmem:[#allocation5 + $0x8] sm:$0xf]
    %v69 = vld [vmem:[#allocation5 + $0xc] sm:$0xf]
    %v70 = vld [vmem:[%s2] sm:$0x1]
    %v72 = vlaneseq
    %v73 = vshrl.u32 %v72, 7
    %v74 = vsub.s32 0, %v73
    %v75 = vrot.slane %v70, %v74
    %v79 = vunpack.c.l.b16 %v64
    %v80 = vunpack.c.l.b16 %v65
    %vm81 = vcmask 1041409
    %v82 = vsel %vm81, %v80, %v79
    %v83 = vpack.c.b16 %v82, %v82
    %v88 = vunpack.c.l.b16 %v66
    %v89 = vunpack.c.l.b16 %v67
    %v90 = vunpack.c.l.b16 %v68
    %v91 = vunpack.c.l.b16 %v69
    %v92 = vpack.c.b16 %v89, %v88
    %v93 = vpack.c.b16 %v91, %v90
    %vm96 = vcmask 261120
    %v98 = vsel %vm96, %v83, 0
    %100 = vmatprep.subr.bf16.mxu0 0
    %101 = vmatpush1.bf16.msra.mxu0 0
    %102 = vmatprep.subr.bf16.mxu0 0
    %103 = vmatpush1.bf16.msra.mxu0 0
    %104 = vmatprep.subr.bf16.mxu0 0
    %105 = vmatpush1.bf16.msra.mxu0 0
    %106 = vmatprep.subr.bf16.mxu0 0
    %107 = vmatpush1.bf16.msra.mxu0 0
    %108 = vmatprep.subr.bf16.mxu0 0
    %109 = vmatpush1.bf16.msra.mxu0 0
    %110 = vmatprep.subr.bf16.mxu0 0
    %111 = vmatpush1.bf16.msra.mxu0 0
    %112 = vmatprep.subr.bf16.mxu0 0
    %113 = vmatpush1.bf16.msra.mxu0 %v93
    %114 = vmatprep.subr.bf16.mxu0 0
    %115 = vmatpush1.bf16.msra.mxu0 %v92
    %116 = vmatprep.subr.bf16.mxu0 0
    %117 = vmatpush2.bf16.msra.mxu0 0
    %118 = vmatprep.subr.bf16.mxu0 0
    %119 = vmatpush2.bf16.msra.mxu0 0
    %120 = vmatprep.subr.bf16.mxu0 0
    %121 = vmatpush2.bf16.msra.mxu0 0
    %122 = vmatprep.subr.bf16.mxu0 0
    %123 = vmatpush2.bf16.msra.mxu0 0
    %124 = vmatprep.subr.bf16.mxu0 0
    %125 = vmatpush2.bf16.msra.mxu0 0
    %126 = vmatprep.subr.bf16.mxu0 0
    %127 = vmatpush2.bf16.msra.mxu0 0
    %128 = vmatprep.subr.bf16.mxu0 0
    %129 = vmatpush2.bf16.msra.mxu0 0
    %130 = vmatprep.subr.bf16.mxu0 0
    %131 = vmatpush2.bf16.msra.mxu0 0
    %132 = vmatprep.mubr.bf16.mxu0 0
    %133 = vmatmul.mubr.bf16.gmra.mxu0 %v98
    %v134 = vpop.f32.mrf.mxu0
    %v135 = vadd.f32 %v75, %v134
    %v136 = vpop.f32.mrf.mxu0
    %v137 = vpop.f32.mrf.mxu0
    %v138 = vpop.f32.mrf.mxu0
    %139 = vdwg.mxu0
    %140 = vst [vmem:[#allocation7] sm:$0x3] %v135
    // Predicated region
    $region22: #{tpu_custom_call.1} parent=1 // pred_check
      _
    $region23: #{tpu_custom_call.1} parent=1 // pred_check_branch
      %142 = sbr.rel (0) target = $region25
    $region24: #{tpu_custom_call.1} parent=1 // pred_region
      %s144 = ssub.s32 32, 32
      %145 = vsyncadd [#allocation4], %s144
      %s147 = sshll.u32 [#allocation7], 4
      %s148 = int_to_ptr.vmem [resolvable:$true] %s147
      %150 = dma.vmem_to_hbm [thread:$0]  %s148, 32, %s3, [#allocation4]
    $region25: #{tpu_custom_call.1} parent=1 // pred_fallthru
      _
    // Predicated region
    $region26: #{tpu_custom_call.1} parent=1 // pred_check
      _
    $region27: #{tpu_custom_call.1} parent=1 // pred_check_branch
      %152 = sbr.rel (0) target = $region29
    $region28: #{tpu_custom_call.1} parent=1 // pred_region
      %153 = dma.done [#allocation4], 32
    $region29: #{tpu_custom_call.1} parent=1 // pred_fallthru
      _
    %154 = vsyncpa [#allocation3], 1
    %155 = vsyncpa [#allocation6], 1
    %156 = vsyncpa [#allocation4], 1

</llo_original>
